<compile_context>
chip_gen: v6e
topology: v6e:2x2x1
jax: 0.10.0
libtpu: 0.0.40
codegen_flags: <defaults>
</compile_context>

<pallas_src>
import math
import numpy as np
import jax
import jax.numpy as jnp
from jax.experimental import pallas as pl
from jax.experimental.pallas import tpu as pltpu

# ---------------------------------------------------------------------------
# sym4 reconstruction filters (pywt convention: rec_lo, rec_hi = qmf(rec_lo))
# ---------------------------------------------------------------------------
SYM4_REC_LO = np.array(
    [0.03222310060404270, -0.012603967262037833, -0.09921954357684722,
     0.29785779560527736, 0.80373875180591610, 0.49761866763201545,
     -0.02963552764599851, -0.07576571478927333], dtype=np.float64)
SYM4_REC_HI = SYM4_REC_LO[::-1].copy()
SYM4_REC_HI[1::2] = -SYM4_REC_HI[1::2]   # quadrature mirror filter


def _synthesis_matrix(g, n):
    """Matrix form of conv_transpose1d(stride=2, padding=L-2) used by pytorch_wavelets sfb1d."""
    L = len(g)
    out_len = 2 * n + 2 - L
    pad = L - 2
    G = np.zeros((out_len, n), dtype=np.float64)
    for col in range(n):
        for k in range(L):
            j = 2 * col + k - pad
            if 0 <= j < out_len:
                G[j, col] += g[k]
    return jnp.asarray(G, jnp.float32)


def select_hierarchical_indices(key, in_features, n_frequency):
    """Replicates FourierLayer._select_hierarchical_indices (cA/cH/cV/cD band allocation)."""
    level_size = in_features // 2
    n_cA = int(n_frequency * 0.6)
    n_cHVD = n_frequency - n_cA
    n_cH = n_cV = n_cD = n_cHVD // 3
    rem = n_cHVD - 3 * n_cH
    rows, cols = [], []
    keys = jax.random.split(key, 4)

    def band(k, n_band, row_off, col_off):
        perm = np.asarray(jax.random.permutation(k, level_size * level_size))[:n_band]
        for idx in perm:
            rows.append(row_off + int(idx) // level_size)
            cols.append(col_off + int(idx) % level_size)

    band(keys[0], n_cA, 0, 0)                                             # cA
    band(keys[1], n_cH + (1 if rem > 0 else 0), 0, level_size)            # cH
    band(keys[2], n_cV + (1 if rem > 1 else 0), level_size, 0)            # cV
    band(keys[3], n_cD + (1 if rem > 2 else 0), level_size, level_size)   # cD
    return np.array(rows, np.int32), np.array(cols, np.int32)


def idwt_sym4(dense_s, in_features):
    """get_delta_weight: quadrant split + DWTInverse(wave='sym4', mode='zero')."""
    half = in_features // 2
    cA = dense_s[:half, :half]
    cH = dense_s[:half, half:]
    cV = dense_s[half:, :half]
    cD = dense_s[half:, half:]
    G0 = _synthesis_matrix(SYM4_REC_LO, half)
    G1 = _synthesis_matrix(SYM4_REC_HI, half)
    # sfb1d along rows (dim=2): lo = G0@cA + G1@cH ; hi = G0@cV + G1@cD
    lo = G0 @ cA + G1 @ cH
    hi = G0 @ cV + G1 @ cD
    # sfb1d along cols (dim=3): y = lo@G0^T + hi@G1^T
    return lo @ G0.T + hi @ G1.T


def bilinear_resize_align_corners_false(img, out_h, out_w):
    """F.interpolate(..., mode='bilinear', align_corners=False) for a 2D array."""
    in_h, in_w = img.shape

    def axis_idx(out_n, in_n):
        scale = in_n / out_n
        src = jnp.maximum((jnp.arange(out_n, dtype=jnp.float32) + 0.5) * scale - 0.5, 0.0)
        i0 = jnp.clip(jnp.floor(src).astype(jnp.int32), 0, in_n - 1)
        i1 = jnp.minimum(i0 + 1, in_n - 1)
        lam = src - i0.astype(jnp.float32)
        return i0, i1, lam

    i0, i1, li = axis_idx(out_h, in_h)
    j0, j1, lj = axis_idx(out_w, in_w)
    r0 = jnp.take(img, i0, axis=0)
    r1 = jnp.take(img, i1, axis=0)
    top = jnp.take(r0, j0, axis=1) * (1.0 - lj)[None, :] + jnp.take(r0, j1, axis=1) * lj[None, :]
    bot = jnp.take(r1, j0, axis=1) * (1.0 - lj)[None, :] + jnp.take(r1, j1, axis=1) * lj[None, :]
    return top * (1.0 - li)[:, None] + bot * li[:, None]


# ---------------------------------------------------------------------------
# Helpers
# ---------------------------------------------------------------------------
def _round_up(v, m):
    return ((v + m - 1) // m) * m


def _cdiv(a, b):
    return (a + b - 1) // b


def _divisor_tile(limit, padded, step):
    """Largest multiple of `step` <= min(limit, padded) that divides `padded`
    (padded is itself a multiple of `step`, so `step` always works)."""
    t = max(step, (min(limit, padded) // step) * step)
    while padded % t != 0:
        t -= step
    return t


# ---------------------------------------------------------------------------
# One-time weight preparation (hoisted out of the per-call path)
# ---------------------------------------------------------------------------
def prepare_fused_weight(weight, bias, delta_w, compute_dtype=jnp.bfloat16):
    """Fold the FourierFT adapter into the base weight once per weight/adapter update.

    out = x @ (W^T + delta_w) + b  ->  single matmul operand, padded to lane-aligned
    (multiple of 128) K/N and cast to `compute_dtype`.  The fold is done in f32 BEFORE
    the cast so the /20-scaled adapter is not lost to bf16 rounding.
    """
    out_features, in_features = weight.shape
    # The reference adds x @ delta_w (shape (..., in)) onto result (shape (..., out)):
    assert in_features == out_features, "FourierFT Linear requires in_features == out_features"
    K, N = in_features, out_features

    w_eff = weight.T.astype(jnp.float32) + delta_w.astype(jnp.float32)   # (K, N) fold in f32
    b = jnp.zeros((N,), jnp.float32) if bias is None else bias.astype(jnp.float32)

    Kp = _round_up(K, 128)
    Np = _round_up(N, 128)
    if (Kp, Np) != (K, N):
        w_eff = jnp.pad(w_eff, ((0, Kp - K), (0, Np - N)))   # zero pad: exact contribution 0
    b2 = b.reshape(1, N)
    if Np != N:
        b2 = jnp.pad(b2, ((0, 0), (0, Np - N)))

    return w_eff.astype(compute_dtype), b2, (K, N)


# ---------------------------------------------------------------------------
# Pallas kernel: fused (base + adapter) linear:  out = x @ (W^T + delta_w) + b
# ---------------------------------------------------------------------------
def _fused_linear_kernel(x_ref, w_ref, b_ref, o_ref, acc_ref):
    k = pl.program_id(2)
    partial = jnp.dot(x_ref[...], w_ref[...], preferred_element_type=jnp.float32)

    @pl.when(k == 0)
    def _():
        acc_ref[...] = partial            # direct write: no zero-init store/reload round trip

    @pl.when(k != 0)
    def _():
        acc_ref[...] += partial

    @pl.when(k == pl.num_programs(2) - 1)
    def _():
        # Bias add as an epilogue on the last K step only.
        o_ref[...] = (acc_ref[...] + b_ref[...]).astype(o_ref.dtype)


def fourier_linear_forward(x, w_pad, b_pad, kn, *, tm=512, tn=512, tk=1024):
    """x: (..., K); w_pad: (Kp, Np) prepared bf16 fused weight; b_pad: (1, Np) f32; kn = (K, N)."""
    K, N = kn
    Kp, Np = w_pad.shape
    lead = x.shape[:-1]
    x2 = x.reshape(-1, K)
    M = x2.shape[0]

    # Tiny adapter dims: lane-alignment padding would multiply MXU work / DMA 4-16x.
    # Plain XLA matmul is faster there; keep the kernel for realistic feature sizes.
    if K < 128 or N < 128:
        out = (jnp.dot(x2.astype(w_pad.dtype), w_pad[:K, :N],
                       preferred_element_type=jnp.float32) + b_pad[:, :N])
        return out.astype(x.dtype).reshape(*lead, N)

    x2 = x2.astype(w_pad.dtype)               # bf16 operands, f32 MXU accumulation
    if Kp != K:
        # K padding is required for dot correctness (zero columns contribute exactly 0).
        x2 = jnp.pad(x2, ((0, 0), (0, Kp - K)))

    # Tile selection: big lane-dense tiles (bf16 double-buffered inputs + f32 acc ~= 7 MiB at the
    # defaults -> fits the 32 MiB scoped VMEM default on all chips, incl. v7x's 64 MiB physical).
    # tn/tk divide the padded dims so output stores are unmasked vst; the ragged last M block is
    # handled by the grid (no padded copy of the activations).
    tm = min(tm, _round_up(M, 8))
    tn = _divisor_tile(tn, Np, 128)
    tk = _divisor_tile(tk, Kp, 128)

    # v7x has 2 TensorCores sharded over 'parallel' grid axes: guarantee >= 2 parallel blocks
    # for small-M (decode-like) shapes so both cores are engaged.
    if _cdiv(M, tm) == 1 and Np // tn == 1 and Np >= 256:
        tn = _divisor_tile(Np // 2, Np, 128)

    grid = (_cdiv(M, tm), Np // tn, Kp // tk)

    out = pl.pallas_call(
        _fused_linear_kernel,
        out_shape=jax.ShapeDtypeStruct((M, Np), x.dtype),
        grid=grid,
        in_specs=[
            pl.BlockSpec((tm, tk), lambda i, j, k: (i, k)),   # activations (bf16)
            pl.BlockSpec((tk, tn), lambda i, j, k: (k, j)),   # fused weight (bf16)
            pl.BlockSpec((1, tn), lambda i, j, k: (0, j)),    # bias (f32, epilogue broadcast)
        ],
        out_specs=pl.BlockSpec((tm, tn), lambda i, j, k: (i, j)),
        scratch_shapes=[pltpu.VMEM((tm, tn), jnp.float32)],
        compiler_params=pltpu.CompilerParams(
            dimension_semantics=("parallel", "parallel", "arbitrary"),
        ),
    )(x2, w_pad, b_pad)

    if Np != N:
        out = out[:, :N]
    return out.reshape(*lead, N)


if __name__ == "__main__":
    # Module-implied configuration: square base nn.Linear, adapter with n_frequency spectrum
    # params.  256 features is small but large enough to exercise the Pallas (lane-dense) path.
    in_features = out_features = 256
    n_frequency = 100
    scale = 0.1  # stored by update_layer but unused in the reference forward (kept for fidelity)
    batch, seq = 2, 8

    key = jax.random.PRNGKey(0)
    k_w, k_b, k_s, k_idx, k_x = jax.random.split(key, 5)

    # Deterministic parameter init (synthetic; nn.Linear-like shapes).
    weight = jax.random.normal(k_w, (out_features, in_features), jnp.float32) / math.sqrt(in_features)
    bias = jax.random.normal(k_b, (out_features,), jnp.float32) * 0.01
    spectrum = jax.random.normal(k_s, (n_frequency,), jnp.float32)   # torch.randn(n_frequency)

    # get_delta_weight: sparse spectrum -> dense -> wavelet quadrants -> IDWT(sym4)
    rows, cols = select_hierarchical_indices(k_idx, in_features, n_frequency)
    dense_s = jnp.zeros((in_features, in_features), jnp.float32).at[rows, cols].add(spectrum)
    delta_w = idwt_sym4(dense_s, in_features)
    delta_w = delta_w / 20.0
    if delta_w.shape != (in_features, in_features):
        delta_w = bilinear_resize_align_corners_false(delta_w, in_features, in_features)
    # TODO(synk): self.delta_w_stats (scalar mean/var logging via .item()) is a host-side side
    # effect that does not affect the output; omitted.

    x = jax.random.normal(k_x, (batch, seq, in_features), jnp.float32)

    # One-time weight-side preparation (hoisted out of the per-call path).
    w_pad, b_pad, kn = prepare_fused_weight(weight, bias, delta_w)

    out = fourier_linear_forward(x, w_pad, b_pad, kn)
    out = jax.block_until_ready(out)
    assert out.shape == (batch, seq, out_features)

    # Check 1 (kernel matmul correctness): bf16-consistent reference.
    x2_bf = x.reshape(-1, in_features).astype(w_pad.dtype)
    ref_bf = (jnp.dot(x2_bf, w_pad[:in_features, :out_features],
                      preferred_element_type=jnp.float32)
              + b_pad[:, :out_features]).reshape(batch, seq, out_features)
    assert jnp.allclose(out, ref_bf, atol=1e-3, rtol=1e-3), "mismatch vs bf16 reference"

    # Check 2 (forward semantics): full-precision reference of the module forward.
    ref = x @ weight.T + bias + jnp.einsum('...i,ij->...j', x, delta_w)
    assert jnp.allclose(out, ref, atol=5e-2, rtol=5e-2), "mismatch vs f32 reference"

    print("KERNEL_OK")
</pallas_src>

<mosaic_0001>
module attributes {stable_mosaic.version = 11 : i64} {
  func.func @_fused_linear_kernel(%arg0: i32, %arg1: i32, %arg2: i32, %arg3: memref<16x256xbf16, #tpu.memory_space<vmem>>, %arg4: memref<256x128xbf16, #tpu.memory_space<vmem>>, %arg5: memref<1x128xf32, #tpu.memory_space<vmem>>, %arg6: memref<16x128xf32, #tpu.memory_space<vmem>>, %arg7: memref<16x128xf32, #tpu.memory_space<vmem>>) attributes {dimension_semantics = [#tpu.dimension_semantics<parallel>, #tpu.dimension_semantics<parallel>, #tpu.dimension_semantics<arbitrary>], iteration_bounds = array<i64: 1, 2, 1>, scalar_prefetch = 0 : i64, scratch_operands = 1 : i64, tpu.core_type = #tpu.core_type<tc>, window_params = [{transform_indices = @transform_0, window_bounds = array<i64: 16, 256>}, {transform_indices = @transform_1, window_bounds = array<i64: 256, 128>}, {transform_indices = @transform_2, window_bounds = array<i64: 1, 128>}, {transform_indices = @transform_3, window_bounds = array<i64: 16, 128>}]} {
    %c0 = arith.constant 0 : index
    %c0_0 = arith.constant 0 : index
    %0 = vector.load %arg3[%c0, %c0_0] : memref<16x256xbf16, #tpu.memory_space<vmem>>, vector<16x256xbf16>
    %c0_1 = arith.constant 0 : index
    %c0_2 = arith.constant 0 : index
    %1 = vector.load %arg4[%c0_1, %c0_2] : memref<256x128xbf16, #tpu.memory_space<vmem>>, vector<256x128xbf16>
    %cst = arith.constant dense<0.000000e+00> : vector<16x128xf32>
    %2 = tpu.matmul %0, %1, %cst {dimension_numbers = #tpu.dot_dimension_numbers<[1], [0], [0], [1], [0, 0, 1, 1], [], []>} : vector<16x256xbf16>, vector<256x128xbf16>, vector<16x128xf32> -> vector<16x128xf32>
    %c0_i32 = arith.constant 0 : i32
    %3 = arith.cmpi eq, %arg2, %c0_i32 : i32
    %4 = arith.extui %3 : i1 to i32
    %c0_i32_3 = arith.constant 0 : i32
    %5 = arith.cmpi ne, %4, %c0_i32_3 : i32
    scf.if %5 {
      %c0_8 = arith.constant 0 : index
      %c0_9 = arith.constant 0 : index
      %12 = vector.load %arg7[%c0_8, %c0_9] : memref<16x128xf32, #tpu.memory_space<vmem>>, vector<16x128xf32>
      tpu.vector_store %arg7[%c0_8, %c0_9], %2 {strides = array<i32>} : memref<16x128xf32, #tpu.memory_space<vmem>>, vector<16x128xf32>,
    } else {
    }
    %c0_i32_4 = arith.constant 0 : i32
    %6 = arith.cmpi ne, %arg2, %c0_i32_4 : i32
    %7 = arith.extui %6 : i1 to i32
    %c0_i32_5 = arith.constant 0 : i32
    %8 = arith.cmpi ne, %7, %c0_i32_5 : i32
    scf.if %8 {
      %c0_8 = arith.constant 0 : index
      %c0_9 = arith.constant 0 : index
      %12 = vector.load %arg7[%c0_8, %c0_9] : memref<16x128xf32, #tpu.memory_space<vmem>>, vector<16x128xf32>
      %13 = arith.addf %12, %2 : vector<16x128xf32>
      %c0_10 = arith.constant 0 : index
      %c0_11 = arith.constant 0 : index
      %14 = vector.load %arg7[%c0_10, %c0_11] : memref<16x128xf32, #tpu.memory_space<vmem>>, vector<16x128xf32>
      tpu.vector_store %arg7[%c0_10, %c0_11], %13 {strides = array<i32>} : memref<16x128xf32, #tpu.memory_space<vmem>>, vector<16x128xf32>,
    } else {
    }
    %c0_i32_6 = arith.constant 0 : i32
    %9 = arith.cmpi eq, %arg2, %c0_i32_6 : i32
    %10 = arith.extui %9 : i1 to i32
    %c0_i32_7 = arith.constant 0 : i32
    %11 = arith.cmpi ne, %10, %c0_i32_7 : i32
    scf.if %11 {
      %c0_8 = arith.constant 0 : index
      %c0_9 = arith.constant 0 : index
      %12 = vector.load %arg7[%c0_8, %c0_9] : memref<16x128xf32, #tpu.memory_space<vmem>>, vector<16x128xf32>
      %c0_10 = arith.constant 0 : index
      %c0_11 = arith.constant 0 : index
      %13 = vector.load %arg5[%c0_10, %c0_11] : memref<1x128xf32, #tpu.memory_space<vmem>>, vector<1x128xf32>
      %14 = vector.broadcast %13 : vector<1x128xf32> to vector<16x128xf32>
      %15 = arith.addf %12, %14 : vector<16x128xf32>
      %c0_12 = arith.constant 0 : index
      %c0_13 = arith.constant 0 : index
      %16 = vector.load %arg6[%c0_12, %c0_13] : memref<16x128xf32, #tpu.memory_space<vmem>>, vector<16x128xf32>
      tpu.vector_store %arg6[%c0_12, %c0_13], %15 {strides = array<i32>} : memref<16x128xf32, #tpu.memory_space<vmem>>, vector<16x128xf32>,
    } else {
    }
    return
  }
  func.func @transform_0(%arg0: i32, %arg1: i32, %arg2: i32) -> (i32, i32) {
    %c0_i32 = arith.constant 0 : i32
    return %arg0, %arg2 : i32, i32
  }
  func.func @transform_1(%arg0: i32, %arg1: i32, %arg2: i32) -> (i32, i32) {
    %c0_i32 = arith.constant 0 : i32
    return %arg2, %arg1 : i32, i32
  }
  func.func @transform_2(%arg0: i32, %arg1: i32, %arg2: i32) -> (i32, i32) {
    %c0_i32 = arith.constant 0 : i32
    %c0_i32_0 = arith.constant 0 : i32
    return %c0_i32, %arg1 : i32, i32
  }
  func.func @transform_3(%arg0: i32, %arg1: i32, %arg2: i32) -> (i32, i32) {
    %c0_i32 = arith.constant 0 : i32
    return %arg0, %arg1 : i32, i32
  }
}

</mosaic_0001>

<llo_original>
// kernel: tpu_custom_call.1
$region0: #{tpu_custom_call.1}
  #allocation0 [shape = 'u32[]', space=smem, size = 0x4, offset = 0x4, fixed_abs, tag = 'smem constant byte address 0x4 - core index']
  #allocation1 [shape = 'u32[144,128]{1,0:T(1,128)}', space=vmem, size = 0x12000, scoped, tag = 'internal scratch']
  #allocation2 [shape = 'f32[16,128]{1,0:T(8,128)}', space=vmem, size = 0x2000, scoped, tag = 'scratch operand']
  %s0 = inlined_call_operand.hbm [shape: bf16[16,256], index: 0, kind: input, shape index: {}]
  %s1 = inlined_call_operand.hbm [shape: bf16[256,256], index: 1, kind: input, shape index: {}]
  %s2 = inlined_call_operand.vmem [shape: f32[1,256], index: 2, kind: input, shape index: {}]
  %s3 = inlined_call_operand.hbm [shape: f32[16,256], index: 3, kind: output, shape index: {}]
  %s4 = sld [smem:[#allocation0]]
  $region65: #{tpu_custom_call.1} parent=0
    _
  %s6 = ssub.s32 1, %s4
  %s7 = scalar_select 0, %s6, %s4
  $region1: #{tpu_custom_call.1} parent=0
    #allocation3 [shape = 'u8[8192]{0}', space=vmem, size = 0x2000, scoped, tag = 'input window, operand 0, single buffered']
    #allocation4 [shape = 's32[2]{0}', space=sflag, size = 0x8, scoped, tag = 'scoped memory for tpu_custom_call.1']
    #allocation5 [shape = 's32[2]{0}', space=sflag, size = 0x8, scoped, tag = 'scoped memory for tpu_custom_call.1']
    #allocation6 [shape = 'u8[131072]{0}', space=vmem, size = 0x20000, scoped, tag = 'input window, operand 1']
    #allocation7 [shape = 's32[2]{0}', space=sflag, size = 0x8, scoped, tag = 'scoped memory for tpu_custom_call.1']
    #allocation8 [shape = 'u8[16384]{0}', space=vmem, size = 0x4000, scoped, tag = 'output window, operand 0']
    %8 = vsyncpa [#allocation4], 0
    %9 = vsyncpa [#allocation7], 0
    %s10 = scalar_lea.sflag [#allocation7], 1
    %11 = vsyncpa %s10, 0
    %12 = vsyncpa [#allocation5], 0
    %s13 = scalar_lea.sflag [#allocation5], 1
    %14 = vsyncpa %s13, 0
    loop: start=0, step=1, limit=4
    $region2: #{tpu_custom_call.1} parent=1 // loop_pre_header
      _
    $region3: #{tpu_custom_call.1} parent=1 // loop_header
      %s16 = sphi 0, %s20
      %p17 = scmp.ge.s32.totalorder %s16, 4
      %s23 = sphi 0, %s42
      %s24 = sphi 0, %s38
      %s25 = sphi 0, %s34
      %s26 = sphi 0, %s23
      %s27 = sphi 0, %s24
      %s28 = sphi 0, %s25
      %s29 = sphi 0, %s26
      %s30 = sphi 0, %s27
      %s31 = sphi 0, %s28
      %s47 = sphi 0, %s49
      %s50 = sphi 0, %s47
      %s51 = sphi 0, %s50
      %s67 = sphi 0, %s51
      %s75 = sphi 0, %s77
      %s78 = sphi 0, %s75
      %s79 = sphi 0, %s78
      %s95 = sphi 0, %s79
      %s101 = sphi 0, %s103
      %s104 = sphi 0, %s101
      %s105 = sphi 0, %s104
      %s121 = sphi 0, %s105
      %s129 = sphi 0, %s131
      %s132 = sphi 0, %s129
      %s133 = sphi 0, %s132
      %s149 = sphi 0, %s133
    $region4: #{tpu_custom_call.1} parent=1 // loop_header_branch
      %19 = sbr.rel (%p17) target = $region8
    $region5: #{tpu_custom_call.1} parent=1 // loop_body
      %s21 = ssub.s32 %s16, 1
      %s22 = ssub.s32 %s16, 2
      %s32 = sadd.s32 1, %s25
      %p33 = scmp.ge.s32.totalorder %s32, 1
      %s34 = scalar_select %p33, 0, %s32
      %s35 = sadd.s32 1, %s24
      %s36 = scalar_select %p33, %s35, %s24
      %p37 = scmp.ge.s32.totalorder %s36, 2
      %s38 = scalar_select %p37, 0, %s36
      %s39 = sadd.s32 1, %s23
      %s40 = scalar_select %p37, %s39, %s23
      %p41 = scmp.ge.s32.totalorder %s40, 1
      %s42 = scalar_select %p41, 0, %s40
      %s43 = ssub.s32 %s23, %s42
      %s44 = ssub.s32 %s25, %s34
      %s45 = sor.u32 %s43, %s44
      %p46 = scmp.eq.s32.totalorder %s45, 0
      %s48 = sadd.s32 %s47, 1
      %s49 = scalar_select %p46, %s47, %s48
      %p52 = pneg %p46
      %p53 = scmp.eq.s32.totalorder %s16, 1
      %p54 = por %p52, %p53
      %p55 = scmp.ne.s32.totalorder %s47, %s50
      %p56 = scmp.eq.s32.totalorder %s16, 0
      %p57 = por %p55, %p56
      %p58 = scmp.ne.s32.totalorder %s47, %s50
      %p59 = scmp.eq.s32.totalorder %s21, 1
      %p60 = por %p58, %p59
      %p61 = scmp.ne.s32.totalorder %s50, %s51
      %p62 = scmp.eq.s32.totalorder %s21, 0
      %p63 = por %p61, %p62
      %p64 = scmp.ne.s32.totalorder %s50, %s51
      %p65 = scmp.eq.s32.totalorder %s22, 1
      %p66 = por %p64, %p65
      %p68 = scmp.ne.s32.totalorder %s51, %s67
      %p69 = scmp.eq.s32.totalorder %s22, 0
      %p70 = por %p68, %p69
      %s71 = ssub.s32 %s25, %s34
      %s72 = ssub.s32 %s24, %s38
      %s73 = sor.u32 %s71, %s72
      %p74 = scmp.eq.s32.totalorder %s73, 0
      %s76 = sadd.s32 %s75, 1
      %s77 = scalar_select %p74, %s75, %s76
      %p80 = pneg %p74
      %p81 = scmp.eq.s32.totalorder %s16, 1
      %p82 = por %p80, %p81
      %p83 = scmp.ne.s32.totalorder %s75, %s78
      %p84 = scmp.eq.s32.totalorder %s16, 0
      %p85 = por %p83, %p84
      %p86 = scmp.ne.s32.totalorder %s75, %s78
      %p87 = scmp.eq.s32.totalorder %s21, 1
      %p88 = por %p86, %p87
      %p89 = scmp.ne.s32.totalorder %s78, %s79
      %p90 = scmp.eq.s32.totalorder %s21, 0
      %p91 = por %p89, %p90
      %p92 = scmp.ne.s32.totalorder %s78, %s79
      %p93 = scmp.eq.s32.totalorder %s22, 1
      %p94 = por %p92, %p93
      %p96 = scmp.ne.s32.totalorder %s79, %s95
      %p97 = scmp.eq.s32.totalorder %s22, 0
      %p98 = por %p96, %p97
      %s99 = ssub.s32 %s24, %s38
      %p100 = scmp.eq.s32.totalorder %s99, 0
      %s102 = sadd.s32 %s101, 1
      %s103 = scalar_select %p100, %s101, %s102
      %p106 = pneg %p100
      %p107 = scmp.eq.s32.totalorder %s16, 1
      %p108 = por %p106, %p107
      %p109 = scmp.ne.s32.totalorder %s101, %s104
      %p110 = scmp.eq.s32.totalorder %s16, 0
      %p111 = por %p109, %p110
      %p112 = scmp.ne.s32.totalorder %s101, %s104
      %p113 = scmp.eq.s32.totalorder %s21, 1
      %p114 = por %p112, %p113
      %p115 = scmp.ne.s32.totalorder %s104, %s105
      %p116 = scmp.eq.s32.totalorder %s21, 0
      %p117 = por %p115, %p116
      %p118 = scmp.ne.s32.totalorder %s104, %s105
      %p119 = scmp.eq.s32.totalorder %s22, 1
      %p120 = por %p118, %p119
      %p122 = scmp.ne.s32.totalorder %s105, %s121
      %p123 = scmp.eq.s32.totalorder %s22, 0
      %p124 = por %p122, %p123
      %s125 = ssub.s32 %s23, %s42
      %s126 = ssub.s32 %s24, %s38
      %s127 = sor.u32 %s125, %s126
      %p128 = scmp.eq.s32.totalorder %s127, 0
      %s130 = sadd.s32 %s129, 1
      %s131 = scalar_select %p128, %s129, %s130
      %p134 = pneg %p128
      %p135 = scmp.eq.s32.totalorder %s16, 1
      %p136 = por %p134, %p135
      %p137 = scmp.ne.s32.totalorder %s129, %s132
      %p138 = scmp.eq.s32.totalorder %s16, 0
      %p139 = por %p137, %p138
      %p140 = scmp.ne.s32.totalorder %s129, %s132
      %p141 = scmp.eq.s32.totalorder %s21, 1
      %p142 = por %p140, %p141
      %p143 = scmp.ne.s32.totalorder %s132, %s133
      %p144 = scmp.eq.s32.totalorder %s21, 0
      %p145 = por %p143, %p144
      %p146 = scmp.ne.s32.totalorder %s132, %s133
      %p147 = scmp.eq.s32.totalorder %s22, 1
      %p148 = por %p146, %p147
      %p150 = scmp.ne.s32.totalorder %s133, %s149
      %p151 = scmp.eq.s32.totalorder %s22, 0
      %p152 = por %p150, %p151
      %p153 = scmp.le.s32.totalorder 1, %s16
      %p154 = scmp.lt.s32.totalorder %s16, 3
      %p155 = pnand %p153, %p154
      %p156 = pneg %p155
      // Predicated region
      $region9: #{tpu_custom_call.1} parent=5 // pred_check
        _
      $region10: #{tpu_custom_call.1} parent=5 // pred_check_branch
        %158 = sbr.rel (%p155) target = $region12
      $region11: #{tpu_custom_call.1} parent=5 // pred_region
        %s159 = ssub.s32 %s16, 1
        // Predicated region
        $region13: #{tpu_custom_call.1} parent=11 // pred_check
          %p160 = pneg %p63
        $region14: #{tpu_custom_call.1} parent=11 // pred_check_branch
          %162 = sbr.rel (%p160) target = $region16
        $region15: #{tpu_custom_call.1} parent=11 // pred_region
          %s163 = smul.u32 2, %s26
          %s164 = smul.u32 2, %s28
          %s166 = ssub.s32 256, 256
          %167 = vsyncadd [#allocation4], %s166
          %s168 = smul.addr %s163, 2
          %s169 = sadd.s32 %s164, %s168
          %s170 = smul.addr %s169, 64
          %s171 = scalar_lea.hbm %s0, %s170
          %s172 = sshll.u32 [#allocation3], 4
          %s173 = int_to_ptr.vmem [resolvable:$true] %s172
          %178 = dma.hbm_to_vmem [thread:$0]  %s171, 256, %s173, [#allocation4], 128, 128, 8
        $region16: #{tpu_custom_call.1} parent=11 // pred_fallthru
          _
      $region12: #{tpu_custom_call.1} parent=5 // pred_fallthru
        _
      %p179 = scmp.lt.s32.totalorder %s16, 2
      // Predicated region
      $region17: #{tpu_custom_call.1} parent=5 // pred_check
        %p180 = pneg %p179
      $region18: #{tpu_custom_call.1} parent=5 // pred_check_branch
        %182 = sbr.rel (%p180) target = $region20
      $region19: #{tpu_custom_call.1} parent=5 // pred_region
        // Predicated region
        $region21: #{tpu_custom_call.1} parent=19 // pred_check
          %p183 = pneg %p85
        $region22: #{tpu_custom_call.1} parent=19 // pred_check_branch
          %185 = sbr.rel (%p183) target = $region24
        $region23: #{tpu_custom_call.1} parent=19 // pred_region
          %s186 = sand.u32 %s75, 1
          %s187 = scalar_lea.sflag [#allocation7], %s186
          %s188 = sand.u32 %s75, 1
          %s189 = smul.addr %s188, 128
          %s190 = scalar_lea.vmem [#allocation6], %s189
          %s191 = smul.u32 32, %s25
          %s193 = ssub.s32 2048, 2048
          %194 = vsyncadd %s187, %s193
          %s195 = smul.addr %s191, 2
          %s196 = sadd.s32 %s24, %s195
          %s197 = smul.addr %s196, 64
          %s198 = scalar_lea.hbm %s1, %s197
          %s199 = sshll.u32 %s190, 4
          %s200 = int_to_ptr.vmem [resolvable:$true] %s199
          %205 = dma.hbm_to_vmem [thread:$0]  %s198, 2048, %s200, %s187, 128, 64, 4
        $region24: #{tpu_custom_call.1} parent=19 // pred_fallthru
          _
        // Predicated region
        $region25: #{tpu_custom_call.1} parent=19 // pred_check
          %p206 = pneg %p111
        $region26: #{tpu_custom_call.1} parent=19 // pred_check_branch
          %208 = sbr.rel (%p206) target = $region28
        $region27: #{tpu_custom_call.1} parent=19 // pred_region
          %p209 = scmp.lt.s32.totalorder %s24, 1
          %s210 = scalar_select %p209, %s24, 1
          %s211 = scalar_lea.vmem %s2, %s210
        $region28: #{tpu_custom_call.1} parent=19 // pred_fallthru
          _
      $region20: #{tpu_custom_call.1} parent=5 // pred_fallthru
        _
      %p212 = scmp.le.s32.totalorder 1, %s16
      %p213 = scmp.lt.s32.totalorder %s16, 3
      %p214 = pnand %p212, %p213
      %p215 = pneg %p214
      // Predicated region
      $region29: #{tpu_custom_call.1} parent=5 // pred_check
        _
      $region30: #{tpu_custom_call.1} parent=5 // pred_check_branch
        %217 = sbr.rel (%p214) target = $region32
      $region31: #{tpu_custom_call.1} parent=5 // pred_region
        %s218 = ssub.s32 %s16, 1
        // Predicated region
        $region33: #{tpu_custom_call.1} parent=31 // pred_check
          %p219 = pneg %p63
        $region34: #{tpu_custom_call.1} parent=31 // pred_check_branch
          %221 = sbr.rel (%p219) target = $region36
        $region35: #{tpu_custom_call.1} parent=31 // pred_region
          %222 = dma.done [#allocation4], 256
        $region36: #{tpu_custom_call.1} parent=31 // pred_fallthru
          _
        %s223 = sand.u32 %s78, 1
        %s224 = scalar_lea.sflag [#allocation7], %s223
        %s225 = sand.u32 %s78, 1
        %s226 = smul.addr %s225, 128
        %s227 = scalar_lea.vmem [#allocation6], %s226
        // Predicated region
        $region37: #{tpu_custom_call.1} parent=31 // pred_check
          %p228 = pneg %p91
        $region38: #{tpu_custom_call.1} parent=31 // pred_check_branch
          %230 = sbr.rel (%p228) target = $region40
        $region39: #{tpu_custom_call.1} parent=31 // pred_region
          %231 = dma.done %s224, 2048
        $region40: #{tpu_custom_call.1} parent=31 // pred_fallthru
          _
        %p232 = pneg %p63
        %p233 = pneg %p60
        %s234 = sand.u32 %s78, 1
        %s235 = scalar_lea.sflag [#allocation7], %s234
        %s236 = sand.u32 %s78, 1
        %s237 = smul.addr %s236, 128
        %s238 = scalar_lea.vmem [#allocation6], %s237
        %p239 = pneg %p91
        %p240 = pneg %p88
        %p241 = scmp.lt.s32.totalorder %s27, 1
        %s242 = scalar_select %p241, %s27, 1
        %s243 = scalar_lea.vmem %s2, %s242
        %p244 = pneg %p117
        %p245 = pneg %p114
        %p246 = pneg %p145
        %p247 = pneg %p142
        %s248 = sand.u32 %s132, 1
        %s249 = scalar_lea.sflag [#allocation5], %s248
        %s250 = sand.u32 %s132, 1
        %s251 = smul.addr %s250, 16
        %s252 = scalar_lea.vmem [#allocation8], %s251
        %s253 = smul.u32 2, %s26
        %s254 = smul.u32 2, %s28
        %s255 = smul.u32 32, %s28
        %p256 = scmp.lt.s32.totalorder %s27, 1
        %s257 = scalar_select %p256, %s27, 1
        %s258 = scalar_lea.vmem %s2, %s257
        %s259 = smul.u32 2, %s26
        %v261 = vld [vmem:[#allocation3] sm:$0xff]
        %v262 = vld [vmem:[#allocation3 + $0x8] sm:$0xff]
        %v263 = vld [vmem:[%s227] sm:$0xf]
        %v264 = vld [vmem:[%s227 + $0x4] sm:$0xf]
        %v265 = vld [vmem:[%s227 + $0x8] sm:$0xf]
        %v266 = vld [vmem:[%s227 + $0xc] sm:$0xf]
        %v267 = vld [vmem:[%s227 + $0x10] sm:$0xf]
        %v268 = vld [vmem:[%s227 + $0x14] sm:$0xf]
        %v269 = vld [vmem:[%s227 + $0x18] sm:$0xf]
        %v270 = vld [vmem:[%s227 + $0x1c] sm:$0xf]
        %v271 = vld [vmem:[%s227 + $0x20] sm:$0xf]
        %v272 = vld [vmem:[%s227 + $0x24] sm:$0xf]
        %v273 = vld [vmem:[%s227 + $0x28] sm:$0xf]
        %v274 = vld [vmem:[%s227 + $0x2c] sm:$0xf]
        %v275 = vld [vmem:[%s227 + $0x30] sm:$0xf]
        %v276 = vld [vmem:[%s227 + $0x34] sm:$0xf]
        %v277 = vld [vmem:[%s227 + $0x38] sm:$0xf]
        %v278 = vld [vmem:[%s227 + $0x3c] sm:$0xf]
        %v279 = vld [vmem:[%s227 + $0x40] sm:$0xf]
        %v280 = vld [vmem:[%s227 + $0x44] sm:$0xf]
        %v281 = vld [vmem:[%s227 + $0x48] sm:$0xf]
        %v282 = vld [vmem:[%s227 + $0x4c] sm:$0xf]
        %v283 = vld [vmem:[%s227 + $0x50] sm:$0xf]
        %v284 = vld [vmem:[%s227 + $0x54] sm:$0xf]
        %v285 = vld [vmem:[%s227 + $0x58] sm:$0xf]
        %v286 = vld [vmem:[%s227 + $0x5c] sm:$0xf]
        %v287 = vld [vmem:[%s227 + $0x60] sm:$0xf]
        %v288 = vld [vmem:[%s227 + $0x64] sm:$0xf]
        %v289 = vld [vmem:[%s227 + $0x68] sm:$0xf]
        %v290 = vld [vmem:[%s227 + $0x6c] sm:$0xf]
        %v291 = vld [vmem:[%s227 + $0x70] sm:$0xf]
        %v292 = vld [vmem:[%s227 + $0x74] sm:$0xf]
        %v293 = vld [vmem:[%s227 + $0x78] sm:$0xf]
        %v294 = vld [vmem:[%s227 + $0x7c] sm:$0xf]
        %v297 = vunpack.c.l.b16 %v261
        %v298 = vunpack.c.h.b16 %v261
        %v299 = vunpack.c.l.b16 %v262
        %v300 = vunpack.c.h.b16 %v262
        %v301 = vpack.c.b16 %v299, %v297
        %v302 = vpack.c.b16 %v300, %v298
        %v337 = vunpack.c.l.b16 %v263
        %v338 = vunpack.c.l.b16 %v264
        %v339 = vunpack.c.l.b16 %v265
        %v340 = vunpack.c.l.b16 %v266
        %v341 = vunpack.c.l.b16 %v267
        %v342 = vunpack.c.l.b16 %v268
        %v343 = vunpack.c.l.b16 %v269
        %v344 = vunpack.c.l.b16 %v270
        %v345 = vunpack.c.l.b16 %v271
        %v346 = vunpack.c.l.b16 %v272
        %v347 = vunpack.c.l.b16 %v273
        %v348 = vunpack.c.l.b16 %v274
        %v349 = vunpack.c.l.b16 %v275
        %v350 = vunpack.c.l.b16 %v276
        %v351 = vunpack.c.l.b16 %v277
        %v352 = vunpack.c.l.b16 %v278
        %v353 = vunpack.c.l.b16 %v279
        %v354 = vunpack.c.l.b16 %v280
        %v355 = vunpack.c.l.b16 %v281
        %v356 = vunpack.c.l.b16 %v282
        %v357 = vunpack.c.l.b16 %v283
        %v358 = vunpack.c.l.b16 %v284
        %v359 = vunpack.c.l.b16 %v285
        %v360 = vunpack.c.l.b16 %v286
        %v361 = vunpack.c.l.b16 %v287
        %v362 = vunpack.c.l.b16 %v288
        %v363 = vunpack.c.l.b16 %v289
        %v364 = vunpack.c.l.b16 %v290
        %v365 = vunpack.c.l.b16 %v291
        %v366 = vunpack.c.l.b16 %v292
        %v367 = vunpack.c.l.b16 %v293
        %v368 = vunpack.c.l.b16 %v294
        %v369 = vpack.c.b16 %v338, %v337
        %v370 = vpack.c.b16 %v340, %v339
        %v371 = vpack.c.b16 %v342, %v341
        %v372 = vpack.c.b16 %v344, %v343
        %v373 = vpack.c.b16 %v346, %v345
        %v374 = vpack.c.b16 %v348, %v347
        %v375 = vpack.c.b16 %v350, %v349
        %v376 = vpack.c.b16 %v352, %v351
        %v377 = vpack.c.b16 %v354, %v353
        %v378 = vpack.c.b16 %v356, %v355
        %v379 = vpack.c.b16 %v358, %v357
        %v380 = vpack.c.b16 %v360, %v359
        %v381 = vpack.c.b16 %v362, %v361
        %v382 = vpack.c.b16 %v364, %v363
        %v383 = vpack.c.b16 %v366, %v365
        %v384 = vpack.c.b16 %v368, %v367
        %401 = vmatprep.subr.bf16.mxu0 0
        %402 = vmatpush1.bf16.msra.mxu0 %v376
        %403 = vmatprep.subr.bf16.mxu0 0
        %404 = vmatpush1.bf16.msra.mxu0 %v375
        %405 = vmatprep.subr.bf16.mxu0 0
        %406 = vmatpush1.bf16.msra.mxu0 %v374
        %407 = vmatprep.subr.bf16.mxu0 0
        %408 = vmatpush1.bf16.msra.mxu0 %v373
        %409 = vmatprep.subr.bf16.mxu0 0
        %410 = vmatpush1.bf16.msra.mxu0 %v372
        %411 = vmatprep.subr.bf16.mxu0 0
        %412 = vmatpush1.bf16.msra.mxu0 %v371
        %413 = vmatprep.subr.bf16.mxu0 0
        %414 = vmatpush1.bf16.msra.mxu0 %v370
        %415 = vmatprep.subr.bf16.mxu0 0
        %416 = vmatpush1.bf16.msra.mxu0 %v369
        %417 = vmatprep.subr.bf16.mxu0 0
        %418 = vmatpush2.bf16.msra.mxu0 %v384
        %419 = vmatprep.subr.bf16.mxu0 0
        %420 = vmatpush2.bf16.msra.mxu0 %v383
        %421 = vmatprep.subr.bf16.mxu0 0
        %422 = vmatpush2.bf16.msra.mxu0 %v382
        %423 = vmatprep.subr.bf16.mxu0 0
        %424 = vmatpush2.bf16.msra.mxu0 %v381
        %425 = vmatprep.subr.bf16.mxu0 0
        %426 = vmatpush2.bf16.msra.mxu0 %v380
        %427 = vmatprep.subr.bf16.mxu0 0
        %428 = vmatpush2.bf16.msra.mxu0 %v379
        %429 = vmatprep.subr.bf16.mxu0 0
        %430 = vmatpush2.bf16.msra.mxu0 %v378
        %431 = vmatprep.subr.bf16.mxu0 0
        %432 = vmatpush2.bf16.msra.mxu0 %v377
        %433 = vmatprep.mubr.bf16.mxu0 %v302
        %434 = vmatmul.mubr.bf16.gmra.mxu0 %v301
        %v435 = vpop.f32.mrf.mxu0
        %v436 = vadd.f32 0.0, %v435
        %v437 = vpop.f32.mrf.mxu0
        %v438 = vpop.f32.mrf.mxu0
        %v439 = vadd.f32 0.0, %v438
        %v440 = vpop.f32.mrf.mxu0
        %441 = vdwg.mxu0
        %p442 = scmp.eq.s32.totalorder %s28, 0
        // Predicated region
        $region41: #{tpu_custom_call.1} parent=31 // pred_check
          %p443 = pneg %p442
        $region42: #{tpu_custom_call.1} parent=31 // pred_check_branch
          %445 = sbr.rel (%p443) target = $region44
        $region43: #{tpu_custom_call.1} parent=31 // pred_region
          %446 = vst [vmem:[#allocation2] sm:$0xff] %v436
          %447 = vst [vmem:[#allocation2 + $0x8] sm:$0xff] %v439
        $region44: #{tpu_custom_call.1} parent=31 // pred_fallthru
          _
        %p448 = scmp.ne.s32.totalorder %s28, 0
        // Predicated region
        $region45: #{tpu_custom_call.1} parent=31 // pred_check
          %p449 = pneg %p448
        $region46: #{tpu_custom_call.1} parent=31 // pred_check_branch
          %451 = sbr.rel (%p449) target = $region48
        $region47: #{tpu_custom_call.1} parent=31 // pred_region
          %v452 = vld [vmem:[#allocation2] sm:$0xff]
          %v453 = vld [vmem:[#allocation2 + $0x8] sm:$0xff]
          %v454 = vadd.f32 %v452, %v436
          %v455 = vadd.f32 %v453, %v439
          %456 = vst [vmem:[#allocation2] sm:$0xff] %v454
          %457 = vst [vmem:[#allocation2 + $0x8] sm:$0xff] %v455
        $region48: #{tpu_custom_call.1} parent=31 // pred_fallthru
          _
        // Predicated region
        $region49: #{tpu_custom_call.1} parent=31 // pred_check
          %p458 = pneg %p442
        $region50: #{tpu_custom_call.1} parent=31 // pred_check_branch
          %460 = sbr.rel (%p458) target = $region52
        $region51: #{tpu_custom_call.1} parent=31 // pred_region
          %v461 = vld [vmem:[#allocation2] sm:$0xff]
          %v462 = vld [vmem:[#allocation2 + $0x8] sm:$0xff]
          %v463 = vld [vmem:[%s258] sm:$0x1]
          %v465 = vlaneseq
          %v466 = vshrl.u32 %v465, 7
          %v467 = vsub.s32 0, %v466
          %v468 = vrot.slane %v463, %v467
          %v470 = vadd.f32 %v461, %v468
          %v471 = vadd.f32 %v462, %v468
          %472 = vst [vmem:[%s252] sm:$0xff] %v470
          %473 = vst [vmem:[%s252 + $0x8] sm:$0xff] %v471
        $region52: #{tpu_custom_call.1} parent=31 // pred_fallthru
          _
        %s474 = sand.u32 %s132, 1
        %s475 = scalar_lea.sflag [#allocation5], %s474
        %s476 = sand.u32 %s132, 1
        %s477 = smul.addr %s476, 16
        %s478 = scalar_lea.vmem [#allocation8], %s477
        // Predicated region
        $region53: #{tpu_custom_call.1} parent=31 // pred_check
          %p479 = pneg %p142
        $region54: #{tpu_custom_call.1} parent=31 // pred_check_branch
          %481 = sbr.rel (%p479) target = $region56
        $region55: #{tpu_custom_call.1} parent=31 // pred_region
          %s482 = smul.u32 2, %s26
          %s484 = ssub.s32 256, 256
          %485 = vsyncadd %s475, %s484
          %s486 = smul.addr %s482, 2
          %s487 = sadd.s32 %s27, %s486
          %s488 = smul.addr %s487, 128
          %s489 = scalar_lea.hbm %s3, %s488
          %s490 = sshll.u32 %s478, 4
          %s491 = int_to_ptr.vmem [resolvable:$true] %s490
          %496 = dma.vmem_to_hbm [thread:$0]  %s491, 256, %s489, %s475, 128, 256, 8
        $region56: #{tpu_custom_call.1} parent=31 // pred_fallthru
          _
      $region32: #{tpu_custom_call.1} parent=5 // pred_fallthru
        _
      %p497 = scmp.le.s32.totalorder 2, %s16
      // Predicated region
      $region57: #{tpu_custom_call.1} parent=5 // pred_check
        %p498 = pneg %p497
      $region58: #{tpu_custom_call.1} parent=5 // pred_check_branch
        %500 = sbr.rel (%p498) target = $region60
      $region59: #{tpu_custom_call.1} parent=5 // pred_region
        %s501 = ssub.s32 %s16, 2
        // Predicated region
        $region61: #{tpu_custom_call.1} parent=59 // pred_check
          %p502 = pneg %p148
        $region62: #{tpu_custom_call.1} parent=59 // pred_check_branch
          %504 = sbr.rel (%p502) target = $region64
        $region63: #{tpu_custom_call.1} parent=59 // pred_region
          %s505 = sand.u32 %s133, 1
          %s506 = scalar_lea.sflag [#allocation5], %s505
          %s507 = sand.u32 %s133, 1
          %s508 = smul.addr %s507, 16
          %s509 = scalar_lea.vmem [#allocation8], %s508
          %510 = dma.done %s506, 256
        $region64: #{tpu_custom_call.1} parent=59 // pred_fallthru
          _
      $region60: #{tpu_custom_call.1} parent=5 // pred_fallthru
        _
    $region6: #{tpu_custom_call.1} parent=1 // loop_footer
      %s20 = sadd.s32 1, %s16
    $region7: #{tpu_custom_call.1} parent=1 // loop_footer_branch
      %15 = sbr.rel target = $region3
    $region8: #{tpu_custom_call.1} parent=1 // loop_exit
      _
    %511 = vsyncpa [#allocation4], 1
    %s512 = scalar_lea.sflag [#allocation4], 1
    %513 = vsyncpa %s512, 1
    %514 = vsyncpa [#allocation7], 1
    %s515 = scalar_lea.sflag [#allocation7], 1
    %516 = vsyncpa %s515, 1
    %517 = vsyncpa [#allocation5], 1
    %s518 = scalar_lea.sflag [#allocation5], 1
    %519 = vsyncpa %s518, 1

</llo_original>
